<compile_context>
chip_gen: v7x
topology: tpu7x:2x2x1
jax: 0.10.0
libtpu: 0.0.40
codegen_flags: <defaults>
</compile_context>

<pallas_src>
import math

import jax
import jax.numpy as jnp
from jax.experimental import pallas as pl
from jax.experimental.pallas import tpu as pltpu


def _attn_weight_kernel(temp_ref, alpha_ref, logits_ref, master_ref, out_ref):
    # temp_ref, alpha_ref : SMEM (1,) f32 scalars
    # logits_ref          : VMEM (TR, S)
    # master_ref          : VMEM (TR, D)
    # out_ref             : VMEM (TR, S)
    temperature = temp_ref[0]
    alpha = alpha_ref[0]

    master = master_ref[...].astype(jnp.float32)                      # (TR, D)
    temp = temperature + jnp.mean(master, axis=-1, keepdims=True)     # (TR, 1)

    x = logits_ref[...].astype(jnp.float32) * temp                    # (TR, S)

    # numerically-stable softmax along the (full, un-tiled) last axis
    row_max = jnp.max(x, axis=-1, keepdims=True)
    e = jnp.exp(x - row_max)
    denom = jnp.sum(e, axis=-1, keepdims=True)

    # fold alpha into the per-row normalizer: one (TR,1) multiply instead of
    # an extra full (TR,S) multiply; approx reciprocal runs on the EUP slot.
    row_scale = alpha * pl.reciprocal(denom, approx=True)             # (TR, 1)

    out_ref[...] = (e * row_scale).astype(out_ref.dtype)


def _physical_vmem_bytes():
    try:
        return int(pltpu.get_tpu_info().vmem_capacity_bytes)
    except Exception:
        return 64 << 20  # conservative (v7x-sized) fallback


def _pick_row_tile(n_rows, s, d, itemsize, vmem_bytes):
    """Largest multiple-of-8 row tile that divides n_rows, fits the VMEM
    budget, and leaves >= 2 grid steps (so both v7x TensorCores get work)."""
    # double-buffered logits + out + master tiles (I/O dtype) + f32 working set
    per_row = 2 * (2 * s + d) * itemsize + (2 * s + d) * 4
    budget = min(vmem_bytes // 4, 16 << 20)   # generous headroom vs. physical
    cap = max(8, (budget // per_row) // 8 * 8)
    if n_rows >= 16:
        cap = min(cap, max(8, (n_rows // 2) // 8 * 8))
    cap = min(cap, n_rows)
    for tr in range(cap - cap % 8, 7, -8):
        if n_rows % tr == 0:
            return tr
    return n_rows  # tiny / odd shapes: single block


def attention_weighting(attn_logits, master, temperature, alpha):
    """attn_logits: (..., S); master: (..., D) with identical leading dims."""
    *lead, S = attn_logits.shape
    *lead_m, D = master.shape
    assert tuple(lead) == tuple(lead_m), "leading dims of logits/master differ"
    R = int(math.prod(lead))

    logits_2d = attn_logits.reshape(R, S)
    master_2d = master.reshape(R, D)

    temp_s = jnp.asarray(temperature, jnp.float32).reshape(1)
    alpha_s = jnp.asarray(alpha, jnp.float32).reshape(1)

    vmem_phys = _physical_vmem_bytes()
    itemsize = jnp.dtype(attn_logits.dtype).itemsize
    TR = _pick_row_tile(R, S, D, itemsize, vmem_phys)
    grid = (R // TR,)

    # Raise scoped VMEM above the default 16-32 MiB, sized to the chip
    # (~64 MiB on 128-MiB v5e/v6e, ~32 MiB on 64-MiB v7x).
    vmem_limit = int(min(max(vmem_phys // 2, 16 << 20), 64 << 20))

    out = pl.pallas_call(
        _attn_weight_kernel,
        out_shape=jax.ShapeDtypeStruct((R, S), attn_logits.dtype),
        grid_spec=pltpu.PrefetchScalarGridSpec(
            num_scalar_prefetch=0,
            grid=grid,
            in_specs=[
                pl.BlockSpec(memory_space=pltpu.MemorySpace.SMEM),   # temperature
                pl.BlockSpec(memory_space=pltpu.MemorySpace.SMEM),   # alpha
                pl.BlockSpec((TR, S), lambda i: (i, 0)),             # logits rows
                pl.BlockSpec((TR, D), lambda i: (i, 0)),             # master rows
            ],
            out_specs=pl.BlockSpec((TR, S), lambda i: (i, 0)),
        ),
        compiler_params=pltpu.CompilerParams(
            dimension_semantics=("parallel",),
            vmem_limit_bytes=vmem_limit),
    )(temp_s, alpha_s, logits_2d, master_2d)

    return out.reshape(*lead, S)


def _reference(attn_logits, master, temperature, alpha):
    temp = temperature + jnp.mean(master, axis=-1, keepdims=True)
    attn = jax.nn.softmax(attn_logits * temp, axis=-1)
    return alpha * attn


if __name__ == "__main__":
    key = jax.random.PRNGKey(0)
    k1, k2 = jax.random.split(key)

    B, H, S, D = 2, 4, 16, 32
    attn_logits = jax.random.normal(k1, (B, H, S, S), dtype=jnp.float32)
    master = jax.random.normal(k2, (B, H, S, D), dtype=jnp.float32)

    # Deterministic parameter init, matching nn.Parameter shapes in __init__:
    temperature = jnp.ones((1,), jnp.float32) * 0.5
    alpha = jnp.ones((1,), jnp.float32)

    out = attention_weighting(attn_logits, master, temperature, alpha)
    out = jax.block_until_ready(out)

    ref = _reference(attn_logits, master, temperature, alpha)
    # Tolerance slightly relaxed vs 1e-5 because the softmax denominator uses
    # the approximate EUP reciprocal (per the perf review); softmax outputs
    # are O(1), so 1e-3 still catches any algorithmic mistake.
    assert jnp.allclose(out, ref, atol=1e-3, rtol=1e-3), "mismatch vs reference"

    print("KERNEL_OK")
</pallas_src>

<mosaic_0001>
module attributes {stable_mosaic.version = 11 : i64} {
  func.func @_attn_weight_kernel(%arg0: i32, %arg1: memref<1xf32, #tpu.memory_space<smem>>, %arg2: memref<1xf32, #tpu.memory_space<smem>>, %arg3: memref<64x16xf32, #tpu.memory_space<vmem>>, %arg4: memref<64x32xf32, #tpu.memory_space<vmem>>, %arg5: memref<64x16xf32, #tpu.memory_space<vmem>>) attributes {dimension_semantics = [#tpu.dimension_semantics<parallel>], iteration_bounds = array<i64: 2>, scalar_prefetch = 0 : i64, scratch_operands = 0 : i64, tpu.core_type = #tpu.core_type<tc>, window_params = [{transform_indices = @transform_0, window_bounds = array<i64: 1>}, {transform_indices = @transform_1, window_bounds = array<i64: 1>}, {transform_indices = @transform_2, window_bounds = array<i64: 64, 16>}, {transform_indices = @transform_3, window_bounds = array<i64: 64, 32>}, {transform_indices = @transform_4, window_bounds = array<i64: 64, 16>}]} {
    %c0 = arith.constant 0 : index
    %0 = memref.load %arg1[%c0] : memref<1xf32, #tpu.memory_space<smem>>
    %c0_0 = arith.constant 0 : index
    %1 = memref.load %arg2[%c0_0] : memref<1xf32, #tpu.memory_space<smem>>
    %c0_1 = arith.constant 0 : index
    %c0_2 = arith.constant 0 : index
    %2 = vector.load %arg4[%c0_1, %c0_2] : memref<64x32xf32, #tpu.memory_space<vmem>>, vector<64x32xf32>
    %cst = arith.constant dense<0.000000e+00> : vector<64xf32>
    %3 = vector.multi_reduction <add>, %2, %cst [1] : vector<64x32xf32> to vector<64xf32>
    %4 = vector.shape_cast %3 : vector<64xf32> to vector<64x1xf32>
    %cst_3 = arith.constant 3.200000e+01 : f32
    %5 = vector.broadcast %cst_3 : f32 to vector<64x1xf32>
    %6 = arith.divf %4, %5 : vector<64x1xf32>
    %7 = vector.broadcast %0 : f32 to vector<64x1xf32>
    %8 = arith.addf %7, %6 : vector<64x1xf32>
    %c0_4 = arith.constant 0 : index
    %c0_5 = arith.constant 0 : index
    %9 = vector.load %arg3[%c0_4, %c0_5] : memref<64x16xf32, #tpu.memory_space<vmem>>, vector<64x16xf32>
    %10 = vector.broadcast %8 : vector<64x1xf32> to vector<64x16xf32>
    %11 = arith.mulf %9, %10 : vector<64x16xf32>
    %cst_6 = arith.constant dense<0xFF800000> : vector<64xf32>
    %12 = vector.multi_reduction <maximumf>, %11, %cst_6 [1] : vector<64x16xf32> to vector<64xf32>
    %13 = vector.shape_cast %12 : vector<64xf32> to vector<64x1xf32>
    %14 = vector.broadcast %13 : vector<64x1xf32> to vector<64x16xf32>
    %15 = arith.subf %11, %14 : vector<64x16xf32>
    %16 = math.exp %15 : vector<64x16xf32>
    %cst_7 = arith.constant dense<0.000000e+00> : vector<64xf32>
    %17 = vector.multi_reduction <add>, %16, %cst_7 [1] : vector<64x16xf32> to vector<64xf32>
    %18 = vector.shape_cast %17 : vector<64xf32> to vector<64x1xf32>
    %19 = tpu.reciprocal %18 {approx = true} : vector<64x1xf32> -> vector<64x1xf32>
    %20 = vector.broadcast %1 : f32 to vector<64x1xf32>
    %21 = arith.mulf %20, %19 : vector<64x1xf32>
    %22 = vector.broadcast %21 : vector<64x1xf32> to vector<64x16xf32>
    %23 = arith.mulf %16, %22 : vector<64x16xf32>
    %c0_8 = arith.constant 0 : index
    %c0_9 = arith.constant 0 : index
    %24 = vector.load %arg5[%c0_8, %c0_9] : memref<64x16xf32, #tpu.memory_space<vmem>>, vector<64x16xf32>
    tpu.vector_store %arg5[%c0_8, %c0_9], %23 {strides = array<i32>} : memref<64x16xf32, #tpu.memory_space<vmem>>, vector<64x16xf32>,
    return
  }
  func.func @transform_0(%arg0: i32) -> i32 {
    %c0_i32 = arith.constant 0 : i32
    %c0_i32_0 = arith.constant 0 : i32
    return %c0_i32 : i32
  }
  func.func @transform_1(%arg0: i32) -> i32 {
    %c0_i32 = arith.constant 0 : i32
    %c0_i32_0 = arith.constant 0 : i32
    return %c0_i32 : i32
  }
  func.func @transform_2(%arg0: i32) -> (i32, i32) {
    %c0_i32 = arith.constant 0 : i32
    %c0_i32_0 = arith.constant 0 : i32
    return %arg0, %c0_i32 : i32, i32
  }
  func.func @transform_3(%arg0: i32) -> (i32, i32) {
    %c0_i32 = arith.constant 0 : i32
    %c0_i32_0 = arith.constant 0 : i32
    return %arg0, %c0_i32 : i32, i32
  }
  func.func @transform_4(%arg0: i32) -> (i32, i32) {
    %c0_i32 = arith.constant 0 : i32
    %c0_i32_0 = arith.constant 0 : i32
    return %arg0, %c0_i32 : i32, i32
  }
}

</mosaic_0001>

<llo_original>
// kernel: tpu_custom_call.1
$region0: #{tpu_custom_call.1}
  #allocation0 [shape = 'u32[]', space=smem, size = 0x4, offset = 0x4, fixed_abs, tag = 'smem constant byte address 0x4 - core index']
  #allocation1 [shape = 'u32[144,128]{1,0:T(1,128)}', space=vmem, size = 0x12000, scoped, tag = 'internal scratch']
  #allocation2 [shape = 'f32[1]{0:T(128)S(6)}', space=smem, size = 0x200, scoped, tag = 'scoped memory for tpu_custom_call.1']
  #allocation3 [shape = 'f32[1]{0:T(128)S(6)}', space=smem, size = 0x200, scoped, tag = 'scoped memory for tpu_custom_call.1']
  %s0 = inlined_call_operand.<no memory space> [shape: f32[1], index: 0, kind: input, shape index: {}]
  %s1 = inlined_call_operand.<no memory space> [shape: f32[1], index: 1, kind: input, shape index: {}]
  %s2 = inlined_call_operand.vmem [shape: f32[128,16], index: 2, kind: input, shape index: {}]
  %s3 = inlined_call_operand.vmem [shape: f32[128,32], index: 3, kind: input, shape index: {}]
  %s4 = inlined_call_operand.vmem [shape: f32[128,16], index: 4, kind: output, shape index: {}]
  %s5 = sld [smem:[#allocation0]]
  $region49: #{tpu_custom_call.1} parent=0
    _
  %s7 = ssub.s32 1, %s5
  %s8 = scalar_select 0, %s7, %s5
  %9 = sst [smem:[#allocation2]] %s0
  %10 = sst [smem:[#allocation3]] %s1
  loop: start=0, step=1, limit=4
  $region2: #{tpu_custom_call.1} parent=0 // loop_pre_header
    _
  $region3: #{tpu_custom_call.1} parent=0 // loop_header
    %s12 = sphi 0, %s16
    %p13 = scmp.ge.s32.totalorder %s12, 4
    %s20 = sphi 0, %s20
    %s22 = sphi 0, %s20
    %s23 = sphi 0, %s22
    %s37 = sphi 0, %s23
    %s41 = sphi 0, %s41
    %s43 = sphi 0, %s41
    %s44 = sphi 0, %s43
    %s58 = sphi 0, %s44
    %s64 = sphi 0, %s66
    %s67 = sphi 0, %s64
    %s68 = sphi 0, %s67
    %s84 = sphi 0, %s68
    %s90 = sphi 0, %s92
    %s93 = sphi 0, %s90
    %s94 = sphi 0, %s93
    %s110 = sphi 0, %s94
    %s116 = sphi 0, %s118
    %s119 = sphi 0, %s116
    %s120 = sphi 0, %s119
    %s136 = sphi 0, %s120
  $region4: #{tpu_custom_call.1} parent=0 // loop_header_branch
    %15 = sbr.rel (%p13) target = $region8
  $region5: #{tpu_custom_call.1} parent=0 // loop_body
    %s17 = ssub.s32 %s12, 1
    %s18 = ssub.s32 %s12, 2
    %s19 = sadd.s32 %s12, 1
    %s21 = sadd.s32 %s20, 1
    %p24 = scmp.eq.s32.totalorder %s12, 1
    %p25 = scmp.ne.s32.totalorder %s20, %s22
    %p26 = scmp.eq.s32.totalorder %s12, 0
    %p27 = por %p25, %p26
    %p28 = scmp.ne.s32.totalorder %s20, %s22
    %p29 = scmp.eq.s32.totalorder %s17, 1
    %p30 = por %p28, %p29
    %p31 = scmp.ne.s32.totalorder %s22, %s23
    %p32 = scmp.eq.s32.totalorder %s17, 0
    %p33 = por %p31, %p32
    %p34 = scmp.ne.s32.totalorder %s22, %s23
    %p35 = scmp.eq.s32.totalorder %s18, 1
    %p36 = por %p34, %p35
    %p38 = scmp.ne.s32.totalorder %s23, %s37
    %p39 = scmp.eq.s32.totalorder %s18, 0
    %p40 = por %p38, %p39
    %s42 = sadd.s32 %s41, 1
    %p45 = scmp.eq.s32.totalorder %s12, 1
    %p46 = scmp.ne.s32.totalorder %s41, %s43
    %p47 = scmp.eq.s32.totalorder %s12, 0
    %p48 = por %p46, %p47
    %p49 = scmp.ne.s32.totalorder %s41, %s43
    %p50 = scmp.eq.s32.totalorder %s17, 1
    %p51 = por %p49, %p50
    %p52 = scmp.ne.s32.totalorder %s43, %s44
    %p53 = scmp.eq.s32.totalorder %s17, 0
    %p54 = por %p52, %p53
    %p55 = scmp.ne.s32.totalorder %s43, %s44
    %p56 = scmp.eq.s32.totalorder %s18, 1
    %p57 = por %p55, %p56
    %p59 = scmp.ne.s32.totalorder %s44, %s58
    %p60 = scmp.eq.s32.totalorder %s18, 0
    %p61 = por %p59, %p60
    %s62 = ssub.s32 %s12, %s19
    %p63 = scmp.eq.s32.totalorder %s62, 0
    %s65 = sadd.s32 %s64, 1
    %s66 = scalar_select %p63, %s64, %s65
    %p69 = pneg %p63
    %p70 = scmp.eq.s32.totalorder %s12, 1
    %p71 = por %p69, %p70
    %p72 = scmp.ne.s32.totalorder %s64, %s67
    %p73 = scmp.eq.s32.totalorder %s12, 0
    %p74 = por %p72, %p73
    %p75 = scmp.ne.s32.totalorder %s64, %s67
    %p76 = scmp.eq.s32.totalorder %s17, 1
    %p77 = por %p75, %p76
    %p78 = scmp.ne.s32.totalorder %s67, %s68
    %p79 = scmp.eq.s32.totalorder %s17, 0
    %p80 = por %p78, %p79
    %p81 = scmp.ne.s32.totalorder %s67, %s68
    %p82 = scmp.eq.s32.totalorder %s18, 1
    %p83 = por %p81, %p82
    %p85 = scmp.ne.s32.totalorder %s68, %s84
    %p86 = scmp.eq.s32.totalorder %s18, 0
    %p87 = por %p85, %p86
    %s88 = ssub.s32 %s12, %s19
    %p89 = scmp.eq.s32.totalorder %s88, 0
    %s91 = sadd.s32 %s90, 1
    %s92 = scalar_select %p89, %s90, %s91
    %p95 = pneg %p89
    %p96 = scmp.eq.s32.totalorder %s12, 1
    %p97 = por %p95, %p96
    %p98 = scmp.ne.s32.totalorder %s90, %s93
    %p99 = scmp.eq.s32.totalorder %s12, 0
    %p100 = por %p98, %p99
    %p101 = scmp.ne.s32.totalorder %s90, %s93
    %p102 = scmp.eq.s32.totalorder %s17, 1
    %p103 = por %p101, %p102
    %p104 = scmp.ne.s32.totalorder %s93, %s94
    %p105 = scmp.eq.s32.totalorder %s17, 0
    %p106 = por %p104, %p105
    %p107 = scmp.ne.s32.totalorder %s93, %s94
    %p108 = scmp.eq.s32.totalorder %s18, 1
    %p109 = por %p107, %p108
    %p111 = scmp.ne.s32.totalorder %s94, %s110
    %p112 = scmp.eq.s32.totalorder %s18, 0
    %p113 = por %p111, %p112
    %s114 = ssub.s32 %s12, %s19
    %p115 = scmp.eq.s32.totalorder %s114, 0
    %s117 = sadd.s32 %s116, 1
    %s118 = scalar_select %p115, %s116, %s117
    %p121 = pneg %p115
    %p122 = scmp.eq.s32.totalorder %s12, 1
    %p123 = por %p121, %p122
    %p124 = scmp.ne.s32.totalorder %s116, %s119
    %p125 = scmp.eq.s32.totalorder %s12, 0
    %p126 = por %p124, %p125
    %p127 = scmp.ne.s32.totalorder %s116, %s119
    %p128 = scmp.eq.s32.totalorder %s17, 1
    %p129 = por %p127, %p128
    %p130 = scmp.ne.s32.totalorder %s119, %s120
    %p131 = scmp.eq.s32.totalorder %s17, 0
    %p132 = por %p130, %p131
    %p133 = scmp.ne.s32.totalorder %s119, %s120
    %p134 = scmp.eq.s32.totalorder %s18, 1
    %p135 = por %p133, %p134
    %p137 = scmp.ne.s32.totalorder %s120, %s136
    %p138 = scmp.eq.s32.totalorder %s18, 0
    %p139 = por %p137, %p138
    %p140 = scmp.le.s32.totalorder 1, %s12
    %p141 = scmp.lt.s32.totalorder %s12, 3
    %p142 = pnand %p140, %p141
    %p143 = pneg %p142
    // Predicated region
    $region9: #{tpu_custom_call.1} parent=5 // pred_check
      _
    $region10: #{tpu_custom_call.1} parent=5 // pred_check_branch
      %145 = sbr.rel (%p142) target = $region12
    $region11: #{tpu_custom_call.1} parent=5 // pred_region
      %s146 = ssub.s32 %s12, 1
      // Predicated region
      $region13: #{tpu_custom_call.1} parent=11 // pred_check
        %p147 = pneg %p33
      $region14: #{tpu_custom_call.1} parent=11 // pred_check_branch
        %149 = sbr.rel (%p147) target = $region16
      $region15: #{tpu_custom_call.1} parent=11 // pred_region
        _
      $region16: #{tpu_custom_call.1} parent=11 // pred_fallthru
        _
      // Predicated region
      $region17: #{tpu_custom_call.1} parent=11 // pred_check
        %p150 = pneg %p54
      $region18: #{tpu_custom_call.1} parent=11 // pred_check_branch
        %152 = sbr.rel (%p150) target = $region20
      $region19: #{tpu_custom_call.1} parent=11 // pred_region
        _
      $region20: #{tpu_custom_call.1} parent=11 // pred_fallthru
        _
    $region12: #{tpu_custom_call.1} parent=5 // pred_fallthru
      _
    %p153 = scmp.lt.s32.totalorder %s12, 2
    // Predicated region
    $region21: #{tpu_custom_call.1} parent=5 // pred_check
      %p154 = pneg %p153
    $region22: #{tpu_custom_call.1} parent=5 // pred_check_branch
      %156 = sbr.rel (%p154) target = $region24
    $region23: #{tpu_custom_call.1} parent=5 // pred_region
      // Predicated region
      $region25: #{tpu_custom_call.1} parent=23 // pred_check
        %p157 = pneg %p74
      $region26: #{tpu_custom_call.1} parent=23 // pred_check_branch
        %159 = sbr.rel (%p157) target = $region28
      $region27: #{tpu_custom_call.1} parent=23 // pred_region
        %s160 = smul.u32 8, %s12
        %p161 = scmp.lt.s32.totalorder %s160, 15
        %s162 = scalar_select %p161, %s160, 15
        %s163 = smul.addr %s162, 8
        %s164 = scalar_lea.vmem %s2, %s163
        %s165 = smul.u32 8, %s12
      $region28: #{tpu_custom_call.1} parent=23 // pred_fallthru
        _
      // Predicated region
      $region29: #{tpu_custom_call.1} parent=23 // pred_check
        %p166 = pneg %p100
      $region30: #{tpu_custom_call.1} parent=23 // pred_check_branch
        %168 = sbr.rel (%p166) target = $region32
      $region31: #{tpu_custom_call.1} parent=23 // pred_region
        %s169 = smul.u32 8, %s12
        %p170 = scmp.lt.s32.totalorder %s169, 15
        %s171 = scalar_select %p170, %s169, 15
        %s172 = smul.addr %s171, 8
        %s173 = scalar_lea.vmem %s3, %s172
        %s174 = smul.u32 8, %s12
      $region32: #{tpu_custom_call.1} parent=23 // pred_fallthru
        _
    $region24: #{tpu_custom_call.1} parent=5 // pred_fallthru
      _
    %p175 = scmp.le.s32.totalorder 1, %s12
    %p176 = scmp.lt.s32.totalorder %s12, 3
    %p177 = pnand %p175, %p176
    %p178 = pneg %p177
    // Predicated region
    $region33: #{tpu_custom_call.1} parent=5 // pred_check
      _
    $region34: #{tpu_custom_call.1} parent=5 // pred_check_branch
      %180 = sbr.rel (%p177) target = $region36
    $region35: #{tpu_custom_call.1} parent=5 // pred_region
      %s181 = ssub.s32 %s12, 1
      %p182 = pneg %p33
      %p183 = pneg %p30
      %p184 = pneg %p54
      %p185 = pneg %p51
      %s186 = smul.u32 8, %s17
      %p187 = scmp.lt.s32.totalorder %s186, 15
      %s188 = scalar_select %p187, %s186, 15
      %s189 = smul.addr %s188, 8
      %s190 = scalar_lea.vmem %s2, %s189
      %p191 = pneg %p80
      %p192 = pneg %p77
      %s193 = smul.u32 8, %s17
      %p194 = scmp.lt.s32.totalorder %s193, 15
      %s195 = scalar_select %p194, %s193, 15
      %s196 = smul.addr %s195, 8
      %s197 = scalar_lea.vmem %s3, %s196
      %p198 = pneg %p106
      %p199 = pneg %p103
      %p200 = pneg %p132
      %p201 = pneg %p129
      %s202 = smul.u32 8, %s17
      %p203 = scmp.lt.s32.totalorder %s202, 15
      %s204 = scalar_select %p203, %s202, 15
      %s205 = smul.addr %s204, 8
      %s206 = scalar_lea.vmem %s4, %s205
      %s207 = smul.u32 8, %s17
      %p208 = scmp.lt.s32.totalorder %s207, 15
      %s209 = scalar_select %p208, %s207, 15
      %s210 = smul.addr %s209, 8
      %s211 = scalar_lea.vmem %s2, %s210
      %s212 = smul.u32 8, %s17
      %s213 = smul.u32 8, %s17
      %p214 = scmp.lt.s32.totalorder %s213, 15
      %s215 = scalar_select %p214, %s213, 15
      %s216 = smul.addr %s215, 8
      %s217 = scalar_lea.vmem %s3, %s216
      %s218 = smul.u32 8, %s17
      %s219 = smul.u32 8, %s17
      %p220 = scmp.lt.s32.totalorder %s219, 15
      %s221 = scalar_select %p220, %s219, 15
      %s222 = smul.addr %s221, 8
      %s223 = scalar_lea.vmem %s4, %s222
      %s224 = smul.u32 8, %s17
      %s225 = sld [smem:[#allocation2]]
      %s226 = sld [smem:[#allocation3]]
      %v227 = vld [vmem:[%s217] sm:$0xff]
      %v228 = vld [vmem:[%s217 + $0x8] sm:$0xff]
      %v229 = vld [vmem:[%s217 + $0x10] sm:$0xff]
      %v230 = vld [vmem:[%s217 + $0x18] sm:$0xff]
      %v231 = vld [vmem:[%s217 + $0x20] sm:$0xff]
      %v232 = vld [vmem:[%s217 + $0x28] sm:$0xff]
      %v233 = vld [vmem:[%s217 + $0x30] sm:$0xff]
      %v234 = vld [vmem:[%s217 + $0x38] sm:$0xff]
      %vm235 = vcmask 261120
      %v236 = vsel %vm235, %v227, 0.0
      %237 = vadd.xlane.f32.xlu0 %v236
      %v238 = vpop.xlane.xlu0 %237
      %v239 = vsel %vm235, %v228, 0.0
      %240 = vadd.xlane.f32.xlu0 %v239
      %v241 = vpop.xlane.xlu0 %240
      %v242 = vsel %vm235, %v229, 0.0
      %243 = vadd.xlane.f32.xlu0 %v242
      %v244 = vpop.xlane.xlu0 %243
      %v245 = vsel %vm235, %v230, 0.0
      %246 = vadd.xlane.f32.xlu0 %v245
      %v247 = vpop.xlane.xlu0 %246
      %v248 = vsel %vm235, %v231, 0.0
      %249 = vadd.xlane.f32.xlu0 %v248
      %v250 = vpop.xlane.xlu0 %249
      %v251 = vsel %vm235, %v232, 0.0
      %252 = vadd.xlane.f32.xlu0 %v251
      %v253 = vpop.xlane.xlu0 %252
      %v254 = vsel %vm235, %v233, 0.0
      %255 = vadd.xlane.f32.xlu0 %v254
      %v256 = vpop.xlane.xlu0 %255
      %v257 = vsel %vm235, %v234, 0.0
      %258 = vadd.xlane.f32.xlu0 %v257
      %v259 = vpop.xlane.xlu0 %258
      %v260 = vrcp.pop 32.0
      %v261 = vmul.f32 %v238, %v260
      %v262 = vmul.f32 %v241, %v260
      %v263 = vmul.f32 %v244, %v260
      %v264 = vmul.f32 %v247, %v260
      %v265 = vmul.f32 %v250, %v260
      %v266 = vmul.f32 %v253, %v260
      %v267 = vmul.f32 %v256, %v260
      %v268 = vmul.f32 %v259, %v260
      %v269 = vstv %s225
      %v270 = vadd.f32 %v269, %v261
      %v271 = vadd.f32 %v269, %v262
      %v272 = vadd.f32 %v269, %v263
      %v273 = vadd.f32 %v269, %v264
      %v274 = vadd.f32 %v269, %v265
      %v275 = vadd.f32 %v269, %v266
      %v276 = vadd.f32 %v269, %v267
      %v277 = vadd.f32 %v269, %v268
      %v278 = vld [vmem:[%s211] sm:$0xff]
      %v279 = vld [vmem:[%s211 + $0x8] sm:$0xff]
      %v280 = vld [vmem:[%s211 + $0x10] sm:$0xff]
      %v281 = vld [vmem:[%s211 + $0x18] sm:$0xff]
      %v282 = vld [vmem:[%s211 + $0x20] sm:$0xff]
      %v283 = vld [vmem:[%s211 + $0x28] sm:$0xff]
      %v284 = vld [vmem:[%s211 + $0x30] sm:$0xff]
      %v285 = vld [vmem:[%s211 + $0x38] sm:$0xff]
      %v286 = vmul.f32 %v278, %v270
      %v287 = vmul.f32 %v279, %v271
      %v288 = vmul.f32 %v280, %v272
      %v289 = vmul.f32 %v281, %v273
      %v290 = vmul.f32 %v282, %v274
      %v291 = vmul.f32 %v283, %v275
      %v292 = vmul.f32 %v284, %v276
      %v293 = vmul.f32 %v285, %v277
      %vm294 = vcmask 130048
      %v295 = vsel %vm294, %v286, -inf
      %296 = vmax.xlane.f32.xlu0 %v295
      %v297 = vpop.xlane.xlu0 %296
      %v298 = vsel %vm294, %v287, -inf
      %299 = vmax.xlane.f32.xlu0 %v298
      %v300 = vpop.xlane.xlu0 %299
      %v301 = vsel %vm294, %v288, -inf
      %302 = vmax.xlane.f32.xlu0 %v301
      %v303 = vpop.xlane.xlu0 %302
      %v304 = vsel %vm294, %v289, -inf
      %305 = vmax.xlane.f32.xlu0 %v304
      %v306 = vpop.xlane.xlu0 %305
      %v307 = vsel %vm294, %v290, -inf
      %308 = vmax.xlane.f32.xlu0 %v307
      %v309 = vpop.xlane.xlu0 %308
      %v310 = vsel %vm294, %v291, -inf
      %311 = vmax.xlane.f32.xlu0 %v310
      %v312 = vpop.xlane.xlu0 %311
      %v313 = vsel %vm294, %v292, -inf
      %314 = vmax.xlane.f32.xlu0 %v313
      %v315 = vpop.xlane.xlu0 %314
      %v316 = vsel %vm294, %v293, -inf
      %317 = vmax.xlane.f32.xlu0 %v316
      %v318 = vpop.xlane.xlu0 %317
      %v319 = vsub.f32 %v286, %v297
      %v320 = vsub.f32 %v287, %v300
      %v321 = vsub.f32 %v288, %v303
      %v322 = vsub.f32 %v289, %v306
      %v323 = vsub.f32 %v290, %v309
      %v324 = vsub.f32 %v291, %v312
      %v325 = vsub.f32 %v292, %v315
      %v326 = vsub.f32 %v293, %v318
      %v327 = vmul.f32 %v319, 1.442695
      %v328 = vpow.pop %v327
      %v329 = vmul.f32 %v320, 1.442695
      %v330 = vpow.pop %v329
      %v331 = vmul.f32 %v321, 1.442695
      %v332 = vpow.pop %v331
      %v333 = vmul.f32 %v322, 1.442695
      %v334 = vpow.pop %v333
      %v335 = vmul.f32 %v323, 1.442695
      %v336 = vpow.pop %v335
      %v337 = vmul.f32 %v324, 1.442695
      %v338 = vpow.pop %v337
      %v339 = vmul.f32 %v325, 1.442695
      %v340 = vpow.pop %v339
      %v341 = vmul.f32 %v326, 1.442695
      %v342 = vpow.pop %v341
      %v343 = vsel %vm294, %v328, 0.0
      %344 = vadd.xlane.f32.xlu0 %v343
      %v345 = vpop.xlane.xlu0 %344
      %v346 = vsel %vm294, %v330, 0.0
      %347 = vadd.xlane.f32.xlu0 %v346
      %v348 = vpop.xlane.xlu0 %347
      %v349 = vsel %vm294, %v332, 0.0
      %350 = vadd.xlane.f32.xlu0 %v349
      %v351 = vpop.xlane.xlu0 %350
      %v352 = vsel %vm294, %v334, 0.0
      %353 = vadd.xlane.f32.xlu0 %v352
      %v354 = vpop.xlane.xlu0 %353
      %v355 = vsel %vm294, %v336, 0.0
      %356 = vadd.xlane.f32.xlu0 %v355
      %v357 = vpop.xlane.xlu0 %356
      %v358 = vsel %vm294, %v338, 0.0
      %359 = vadd.xlane.f32.xlu0 %v358
      %v360 = vpop.xlane.xlu0 %359
      %v361 = vsel %vm294, %v340, 0.0
      %362 = vadd.xlane.f32.xlu0 %v361
      %v363 = vpop.xlane.xlu0 %362
      %v364 = vsel %vm294, %v342, 0.0
      %365 = vadd.xlane.f32.xlu0 %v364
      %v366 = vpop.xlane.xlu0 %365
      %v367 = vrcp.pop %v345
      %v368 = vrcp.pop %v348
      %v369 = vrcp.pop %v351
      %v370 = vrcp.pop %v354
      %v371 = vrcp.pop %v357
      %v372 = vrcp.pop %v360
      %v373 = vrcp.pop %v363
      %v374 = vrcp.pop %v366
      %v375 = vstv %s226
      %v376 = vmul.f32 %v375, %v367
      %v377 = vmul.f32 %v375, %v368
      %v378 = vmul.f32 %v375, %v369
      %v379 = vmul.f32 %v375, %v370
      %v380 = vmul.f32 %v375, %v371
      %v381 = vmul.f32 %v375, %v372
      %v382 = vmul.f32 %v375, %v373
      %v383 = vmul.f32 %v375, %v374
      %v384 = vmul.f32 %v328, %v376
      %v385 = vmul.f32 %v330, %v377
      %v386 = vmul.f32 %v332, %v378
      %v387 = vmul.f32 %v334, %v379
      %v388 = vmul.f32 %v336, %v380
      %v389 = vmul.f32 %v338, %v381
      %v390 = vmul.f32 %v340, %v382
      %v391 = vmul.f32 %v342, %v383
      %392 = vst.msk [vmem:[%s223] sm:$0xff] %vm294, %v384
      %393 = vst.msk [vmem:[%s223 + $0x8] sm:$0xff] %vm294, %v385
      %394 = vst.msk [vmem:[%s223 + $0x10] sm:$0xff] %vm294, %v386
      %395 = vst.msk [vmem:[%s223 + $0x18] sm:$0xff] %vm294, %v387
      %396 = vst.msk [vmem:[%s223 + $0x20] sm:$0xff] %vm294, %v388
      %397 = vst.msk [vmem:[%s223 + $0x28] sm:$0xff] %vm294, %v389
      %398 = vst.msk [vmem:[%s223 + $0x30] sm:$0xff] %vm294, %v390
      %399 = vst.msk [vmem:[%s223 + $0x38] sm:$0xff] %vm294, %v391
      %s400 = smul.u32 8, %s17
      %p401 = scmp.lt.s32.totalorder %s400, 15
      %s402 = scalar_select %p401, %s400, 15
      %s403 = smul.addr %s402, 8
      %s404 = scalar_lea.vmem %s4, %s403
      // Predicated region
      $region37: #{tpu_custom_call.1} parent=35 // pred_check
        %p405 = pneg %p129
      $region38: #{tpu_custom_call.1} parent=35 // pred_check_branch
        %407 = sbr.rel (%p405) target = $region40
      $region39: #{tpu_custom_call.1} parent=35 // pred_region
        %s408 = smul.u32 8, %s17
      $region40: #{tpu_custom_call.1} parent=35 // pred_fallthru
        _
    $region36: #{tpu_custom_call.1} parent=5 // pred_fallthru
      _
    %p409 = scmp.le.s32.totalorder 2, %s12
    // Predicated region
    $region41: #{tpu_custom_call.1} parent=5 // pred_check
      %p410 = pneg %p409
    $region42: #{tpu_custom_call.1} parent=5 // pred_check_branch
      %412 = sbr.rel (%p410) target = $region44
    $region43: #{tpu_custom_call.1} parent=5 // pred_region
      %s413 = ssub.s32 %s12, 2
      // Predicated region
      $region45: #{tpu_custom_call.1} parent=43 // pred_check
        %p414 = pneg %p135
      $region46: #{tpu_custom_call.1} parent=43 // pred_check_branch
        %416 = sbr.rel (%p414) target = $region48
      $region47: #{tpu_custom_call.1} parent=43 // pred_region
        %s417 = smul.u32 8, %s18
        %p418 = scmp.lt.s32.totalorder %s417, 15
        %s419 = scalar_select %p418, %s417, 15
        %s420 = smul.addr %s419, 8
        %s421 = scalar_lea.vmem %s4, %s420
      $region48: #{tpu_custom_call.1} parent=43 // pred_fallthru
        _
    $region44: #{tpu_custom_call.1} parent=5 // pred_fallthru
      _
  $region6: #{tpu_custom_call.1} parent=0 // loop_footer
    %s16 = sadd.s32 1, %s12
  $region7: #{tpu_custom_call.1} parent=0 // loop_footer_branch
    %11 = sbr.rel target = $region3
  $region8: #{tpu_custom_call.1} parent=0 // loop_exit
    _

</llo_original>
